<compile_context>
chip_gen: v7x
topology: tpu7x:2x2x1
jax: 0.10.0
libtpu: 0.0.40
codegen_flags: <defaults>
</compile_context>

<pallas_src>
import functools

import jax
import jax.numpy as jnp
from jax import lax
from jax.experimental import pallas as pl
from jax.experimental.pallas import tpu as pltpu

_LANES = 128


def _round_up(v, m):
    return -(-v // m) * m


def gap_linear_kernel(x_ref, wt_ref, b_ref, out_ref, fea_ref, acc_ref, *,
                      inv_s, total_s, tile_s, acc_w, masked):
    # x_ref:   (TN, C, tile_s)    streamed spatial tile, native dtype
    # wt_ref:  (C, OUT_PAD) f32   fc weight, pre-transposed + lane padded
    # b_ref:   (1, OUT_PAD) f32
    # out_ref: (TN, OUT_PAD)      x.dtype
    # fea_ref: (TN, C_PAD)        x.dtype
    # acc_ref: (TN, C, acc_w) f32 persistent partial-sum accumulator
    s = pl.program_id(1)
    tn, c, _ = x_ref.shape
    c_pad = fea_ref.shape[-1]

    @pl.when(s == 0)
    def _():
        acc_ref[...] = jnp.zeros_like(acc_ref)

    acc = acc_ref[...]

    if masked:
        # Number of in-bounds lanes left in this tile (>= tile_s except on the
        # ragged last tile).  Zeroing the out-of-bounds lanes keeps the sum
        # exact; inv_s uses the true spatial size.
        valid = total_s - s * tile_s
        lane = lax.broadcasted_iota(jnp.int32, (tn, c, acc_w), 2)

    def add_chunk(a, start):
        chunk = x_ref[:, :, pl.ds(start, acc_w)].astype(jnp.float32)
        if masked:
            chunk = jnp.where(lane < (valid - start), chunk, 0.0)
        return a + chunk

    n_chunks = tile_s // acc_w            # rem == 0 by construction (wrapper)
    if n_chunks <= 8:
        for j in range(n_chunks):         # short static unroll
            acc = add_chunk(acc, j * acc_w)
    else:
        acc = lax.fori_loop(
            0, n_chunks,
            lambda j, a: add_chunk(a, pl.multiple_of(j * acc_w, acc_w)),
            acc, unroll=4)
    acc_ref[...] = acc

    @pl.when(s == pl.num_programs(1) - 1)
    def _():
        # One cross-lane reduce + one tiny GEMM per batch tile.
        fea = jnp.sum(acc_ref[...], axis=-1) * inv_s          # (TN, C) f32
        if c_pad != c:
            fea_st = jnp.concatenate(
                [fea, jnp.zeros((tn, c_pad - c), jnp.float32)], axis=-1)
        else:
            fea_st = fea
        fea_ref[...] = fea_st.astype(fea_ref.dtype)
        out = jnp.dot(fea, wt_ref[...],
                      preferred_element_type=jnp.float32) + b_ref[...]
        out_ref[...] = out.astype(out_ref.dtype)


def gap_linear(x, weight, bias, *, tile_bytes_target=1 << 20):
    """x: (N, C, D, H, W); weight: (out_c, C); bias: (out_c,).

    Returns (out, fea) matching the PyTorch module's (x, fea).
    """
    N, C, D, H, W = x.shape
    S = D * H * W
    out_c = weight.shape[0]
    out_pad = _round_up(out_c, _LANES)
    c_pad = _round_up(C, _LANES)
    itemsize = jnp.dtype(x.dtype).itemsize

    # Batch tile: <= 8 rows so the 2-D (TN, OUT_PAD)/(TN, C_PAD) output blocks
    # stay legal (TN == N or TN a multiple of 8).
    tn = min(N, 8)

    # Accumulator width: up to 512 lanes (4 independent 128-lane groups per
    # sublane row -> per-chunk VPU adds don't form one long serial chain),
    # bounded by a small VMEM budget; always a multiple of 128.
    acc_budget = 1 << 20
    acc_w = min(4 * _LANES,
                max(_LANES, (acc_budget // (tn * C * 4)) // _LANES * _LANES))

    # Spatial tile: sized by bytes (~tile_bytes_target per buffer), a multiple
    # of acc_w.  If all of S fits in a single tile there is no ragged tail to
    # mask and one grid step covers the whole reduction.
    lanes_cap = max(acc_w,
                    (tile_bytes_target // (tn * C * itemsize)) // acc_w * acc_w)
    if S <= lanes_cap:
        ts = S
        if S % acc_w != 0:
            acc_w = S          # single full-width chunk; keeps rem == 0
        masked = False
    else:
        ts = lanes_cap         # multiple of acc_w (and of 128)
        masked = (S % ts) != 0

    grid = (pl.cdiv(N, tn), pl.cdiv(S, ts))

    # Free metadata reshape (contiguous collapse) — no HBM copy, no pad.
    x_flat = x.reshape(N, C, S)

    wt = jnp.zeros((C, out_pad), jnp.float32).at[:, :out_c].set(
        weight.T.astype(jnp.float32))
    b2 = jnp.zeros((1, out_pad), jnp.float32).at[:, :out_c].set(
        bias.astype(jnp.float32))

    kernel = functools.partial(
        gap_linear_kernel, inv_s=1.0 / S, total_s=S, tile_s=ts,
        acc_w=acc_w, masked=masked)

    x_tile_bytes = tn * C * ts * itemsize
    acc_bytes = tn * C * acc_w * 4
    wt_bytes = C * out_pad * 4
    vmem_limit = int(min(64 << 20,
                         max(32 << 20,
                             4 * x_tile_bytes + 2 * acc_bytes
                             + 4 * wt_bytes + (4 << 20))))

    out_p, fea_p = pl.pallas_call(
        kernel,
        out_shape=(
            jax.ShapeDtypeStruct((N, out_pad), x.dtype),
            jax.ShapeDtypeStruct((N, c_pad), x.dtype),
        ),
        grid_spec=pltpu.PrefetchScalarGridSpec(
            num_scalar_prefetch=0,
            grid=grid,
            in_specs=[
                pl.BlockSpec((tn, C, ts), lambda n, s: (n, 0, s)),
                pl.BlockSpec((C, out_pad), lambda n, s: (0, 0)),
                pl.BlockSpec((1, out_pad), lambda n, s: (0, 0)),
            ],
            out_specs=(
                pl.BlockSpec((tn, out_pad), lambda n, s: (n, 0)),
                pl.BlockSpec((tn, c_pad), lambda n, s: (n, 0)),
            ),
            scratch_shapes=[pltpu.VMEM((tn, C, acc_w), jnp.float32)],
        ),
        compiler_params=pltpu.CompilerParams(
            dimension_semantics=("parallel", "arbitrary"),
            vmem_limit_bytes=vmem_limit,
        ),
        cost_estimate=pl.CostEstimate(
            flops=N * C * S + 2 * N * C * out_pad,
            transcendentals=0,
            bytes_accessed=N * C * S * itemsize
            + (C + 1) * out_pad * 4
            + N * (out_pad + c_pad) * itemsize,
        ),
    )(x_flat, wt, b2)

    out = out_p[:, :out_c]
    fea = fea_p[:, :C]
    return out, fea


if __name__ == "__main__":
    key = jax.random.PRNGKey(0)
    kx, kw, kb = jax.random.split(key, 3)

    # Small shapes consistent with the module: 5-D NCDHW input.
    N, C, D, H, W = 2, 16, 4, 4, 4        # in_channels = 16
    out_channels = 8

    x = jax.random.normal(kx, (N, C, D, H, W), dtype=jnp.float32)
    # Deterministic PyTorch-style Linear init: U(-1/sqrt(in), 1/sqrt(in)).
    bound = 1.0 / (C ** 0.5)
    weight = jax.random.uniform(kw, (out_channels, C), jnp.float32, -bound, bound)
    bias = jax.random.uniform(kb, (out_channels,), jnp.float32, -bound, bound)

    out, fea = gap_linear(x, weight, bias)
    out = jax.block_until_ready(out)
    fea = jax.block_until_ready(fea)

    # Pure-JAX reference check of the forward semantics.
    fea_ref = x.reshape(N, C, -1).mean(axis=-1)            # AdaptiveAvgPool3d(1) + view
    out_ref = fea_ref @ weight.T + bias                    # nn.Linear
    assert jnp.allclose(fea, fea_ref, atol=1e-5, rtol=1e-5)
    assert jnp.allclose(out, out_ref, atol=1e-5, rtol=1e-5)

    print("KERNEL_OK")
</pallas_src>

<mosaic_0001>
module attributes {stable_mosaic.version = 11 : i64} {
  func.func @gap_linear_kernel(%arg0: i32, %arg1: i32, %arg2: memref<2x16x64xf32, #tpu.memory_space<vmem>>, %arg3: memref<16x128xf32, #tpu.memory_space<vmem>>, %arg4: memref<1x128xf32, #tpu.memory_space<vmem>>, %arg5: memref<2x128xf32, #tpu.memory_space<vmem>>, %arg6: memref<2x128xf32, #tpu.memory_space<vmem>>, %arg7: memref<2x16x64xf32, #tpu.memory_space<vmem>>) attributes {dimension_semantics = [#tpu.dimension_semantics<parallel>, #tpu.dimension_semantics<arbitrary>], iteration_bounds = array<i64: 1, 1>, scalar_prefetch = 0 : i64, scratch_operands = 1 : i64, tpu.core_type = #tpu.core_type<tc>, window_params = [{transform_indices = @transform_0, window_bounds = array<i64: 2, 16, 64>}, {pipeline_mode = #tpu.pipeline_mode<synchronous>, transform_indices = @transform_1, window_bounds = array<i64: 16, 128>}, {pipeline_mode = #tpu.pipeline_mode<synchronous>, transform_indices = @transform_2, window_bounds = array<i64: 1, 128>}, {transform_indices = @transform_3, window_bounds = array<i64: 2, 128>}, {transform_indices = @transform_4, window_bounds = array<i64: 2, 128>}]} {
    %c0_i32 = arith.constant 0 : i32
    %0 = arith.cmpi eq, %arg1, %c0_i32 : i32
    %1 = arith.extui %0 : i1 to i32
    %c0_i32_0 = arith.constant 0 : i32
    %2 = arith.cmpi ne, %1, %c0_i32_0 : i32
    scf.if %2 {
      %cst = arith.constant 0.000000e+00 : f32
      %10 = vector.broadcast %cst : f32 to vector<2x16x64xf32>
      %c0_11 = arith.constant 0 : index
      %c0_12 = arith.constant 0 : index
      %c0_13 = arith.constant 0 : index
      %11 = vector.load %arg7[%c0_11, %c0_12, %c0_13] : memref<2x16x64xf32, #tpu.memory_space<vmem>>, vector<2x16x64xf32>
      tpu.vector_store %arg7[%c0_11, %c0_12, %c0_13], %10 {strides = array<i32>} : memref<2x16x64xf32, #tpu.memory_space<vmem>>, vector<2x16x64xf32>,
    } else {
    }
    %c0 = arith.constant 0 : index
    %c0_1 = arith.constant 0 : index
    %c0_2 = arith.constant 0 : index
    %3 = vector.load %arg7[%c0, %c0_1, %c0_2] : memref<2x16x64xf32, #tpu.memory_space<vmem>>, vector<2x16x64xf32>
    %c0_3 = arith.constant 0 : index
    %c0_4 = arith.constant 0 : index
    %c0_5 = arith.constant 0 : index
    %4 = vector.load %arg2[%c0_3, %c0_4, %c0_5] : memref<2x16x64xf32, #tpu.memory_space<vmem>>, vector<2x16x64xf32>
    %5 = arith.addf %3, %4 : vector<2x16x64xf32>
    %c0_6 = arith.constant 0 : index
    %c0_7 = arith.constant 0 : index
    %c0_8 = arith.constant 0 : index
    %6 = vector.load %arg7[%c0_6, %c0_7, %c0_8] : memref<2x16x64xf32, #tpu.memory_space<vmem>>, vector<2x16x64xf32>
    tpu.vector_store %arg7[%c0_6, %c0_7, %c0_8], %5 {strides = array<i32>} : memref<2x16x64xf32, #tpu.memory_space<vmem>>, vector<2x16x64xf32>,
    %c0_i32_9 = arith.constant 0 : i32
    %7 = arith.cmpi eq, %arg1, %c0_i32_9 : i32
    %8 = arith.extui %7 : i1 to i32
    %c0_i32_10 = arith.constant 0 : i32
    %9 = arith.cmpi ne, %8, %c0_i32_10 : i32
    scf.if %9 {
      %c0_11 = arith.constant 0 : index
      %c0_12 = arith.constant 0 : index
      %c0_13 = arith.constant 0 : index
      %10 = vector.load %arg7[%c0_11, %c0_12, %c0_13] : memref<2x16x64xf32, #tpu.memory_space<vmem>>, vector<2x16x64xf32>
      %cst = arith.constant dense<0.000000e+00> : vector<2x16xf32>
      %11 = vector.multi_reduction <add>, %10, %cst [2] : vector<2x16x64xf32> to vector<2x16xf32>
      %cst_14 = arith.constant 1.562500e-02 : f32
      %12 = vector.broadcast %cst_14 : f32 to vector<2x16xf32>
      %13 = arith.mulf %11, %12 : vector<2x16xf32>
      %cst_15 = arith.constant 0.000000e+00 : f32
      %14 = vector.broadcast %cst_15 : f32 to vector<2x112xf32>
      %15 = tpu.concatenate %13, %14 in 1 : vector<2x16xf32>, vector<2x112xf32> -> vector<2x128xf32>
      %c0_16 = arith.constant 0 : index
      %c0_17 = arith.constant 0 : index
      %16 = vector.load %arg6[%c0_16, %c0_17] : memref<2x128xf32, #tpu.memory_space<vmem>>, vector<2x128xf32>
      tpu.vector_store %arg6[%c0_16, %c0_17], %15 {strides = array<i32>} : memref<2x128xf32, #tpu.memory_space<vmem>>, vector<2x128xf32>,
      %c0_18 = arith.constant 0 : index
      %c0_19 = arith.constant 0 : index
      %17 = vector.load %arg3[%c0_18, %c0_19] : memref<16x128xf32, #tpu.memory_space<vmem>>, vector<16x128xf32>
      %cst_20 = arith.constant dense<0.000000e+00> : vector<2x128xf32>
      %18 = tpu.matmul %13, %17, %cst_20 {dimension_numbers = #tpu.dot_dimension_numbers<[1], [0], [0], [1], [0, 0, 1, 1], [], []>} : vector<2x16xf32>, vector<16x128xf32>, vector<2x128xf32> -> vector<2x128xf32>
      %c0_21 = arith.constant 0 : index
      %c0_22 = arith.constant 0 : index
      %19 = vector.load %arg4[%c0_21, %c0_22] : memref<1x128xf32, #tpu.memory_space<vmem>>, vector<1x128xf32>
      %20 = vector.broadcast %19 : vector<1x128xf32> to vector<2x128xf32>
      %21 = arith.addf %18, %20 : vector<2x128xf32>
      %c0_23 = arith.constant 0 : index
      %c0_24 = arith.constant 0 : index
      %22 = vector.load %arg5[%c0_23, %c0_24] : memref<2x128xf32, #tpu.memory_space<vmem>>, vector<2x128xf32>
      tpu.vector_store %arg5[%c0_23, %c0_24], %21 {strides = array<i32>} : memref<2x128xf32, #tpu.memory_space<vmem>>, vector<2x128xf32>,
    } else {
    }
    return
  }
  func.func @transform_0(%arg0: i32, %arg1: i32) -> (i32, i32, i32) {
    %c0_i32 = arith.constant 0 : i32
    %c0_i32_0 = arith.constant 0 : i32
    return %arg0, %c0_i32, %arg1 : i32, i32, i32
  }
  func.func @transform_1(%arg0: i32, %arg1: i32) -> (i32, i32) {
    %c0_i32 = arith.constant 0 : i32
    %c0_i32_0 = arith.constant 0 : i32
    %c0_i32_1 = arith.constant 0 : i32
    return %c0_i32, %c0_i32_0 : i32, i32
  }
  func.func @transform_2(%arg0: i32, %arg1: i32) -> (i32, i32) {
    %c0_i32 = arith.constant 0 : i32
    %c0_i32_0 = arith.constant 0 : i32
    %c0_i32_1 = arith.constant 0 : i32
    return %c0_i32, %c0_i32_0 : i32, i32
  }
  func.func @transform_3(%arg0: i32, %arg1: i32) -> (i32, i32) {
    %c0_i32 = arith.constant 0 : i32
    %c0_i32_0 = arith.constant 0 : i32
    return %arg0, %c0_i32 : i32, i32
  }
  func.func @transform_4(%arg0: i32, %arg1: i32) -> (i32, i32) {
    %c0_i32 = arith.constant 0 : i32
    %c0_i32_0 = arith.constant 0 : i32
    return %arg0, %c0_i32 : i32, i32
  }
}

</mosaic_0001>

<llo_original>
// kernel: tpu_custom_call.1
$region0: #{tpu_custom_call.1}
  #allocation0 [shape = 'u32[]', space=smem, size = 0x4, offset = 0x4, fixed_abs, tag = 'smem constant byte address 0x4 - core index']
  #allocation1 [shape = 'u32[144,128]{1,0:T(1,128)}', space=vmem, size = 0x12000, scoped, tag = 'internal scratch']
  #allocation2 [shape = 'f32[2,16,64]{2,1,0:T(8,128)}', space=vmem, size = 0x4000, scoped, tag = 'scratch operand']
  %s0 = inlined_call_operand.hbm [shape: f32[2,16,64], index: 0, kind: input, shape index: {}]
  %s1 = inlined_call_operand.hbm [shape: f32[16,128], index: 1, kind: input, shape index: {}]
  %s2 = inlined_call_operand.vmem [shape: f32[1,128], index: 2, kind: input, shape index: {}]
  %s3 = inlined_call_operand.hbm [shape: f32[2,128], index: 3, kind: output, shape index: {0}]
  %s4 = inlined_call_operand.hbm [shape: f32[2,128], index: 4, kind: output, shape index: {1}]
  %5 = xla_tuple %s3, %s4
  %s6 = sld [smem:[#allocation0]]
  $region46: #{tpu_custom_call.1} parent=0
    _
  %s8 = ssub.s32 1, %s6
  %s9 = scalar_select 0, %s8, %s6
  $region1: #{tpu_custom_call.1} parent=0
    #allocation3 [shape = 'u8[16384]{0}', space=vmem, size = 0x4000, scoped, tag = 'input window, operand 0, single buffered']
    #allocation4 [shape = 's32[1]{0}', space=sflag, size = 0x4, scoped, tag = 'scoped memory for tpu_custom_call.1']
    #allocation5 [shape = 's32[1]{0}', space=sflag, size = 0x4, scoped, tag = 'scoped memory for tpu_custom_call.1']
    #allocation6 [shape = 'u8[8192]{0}', space=vmem, size = 0x2000, scoped, tag = 'input window, operand 1, single buffered']
    #allocation7 [shape = 's32[1]{0}', space=sflag, size = 0x4, scoped, tag = 'scoped memory for tpu_custom_call.1']
    #allocation8 [shape = 'u8[1024]{0}', space=vmem, size = 0x400, scoped, tag = 'output window, operand 0, single buffered']
    #allocation9 [shape = 'u8[1024]{0}', space=vmem, size = 0x400, scoped, tag = 'output window, operand 1, single buffered']
    #allocation10 [shape = 's32[1]{0}', space=sflag, size = 0x4, scoped, tag = 'scoped memory for tpu_custom_call.1']
    %10 = vsyncpa [#allocation4], 0
    %11 = vsyncpa [#allocation7], 0
    %12 = vsyncpa [#allocation5], 0
    %13 = vsyncpa [#allocation10], 0
    // Predicated region
    $region2: #{tpu_custom_call.1} parent=1 // pred_check
      _
    $region3: #{tpu_custom_call.1} parent=1 // pred_check_branch
      %15 = sbr.rel (0) target = $region5
    $region4: #{tpu_custom_call.1} parent=1 // pred_region
      %s17 = ssub.s32 512, 512
      %18 = vsyncadd [#allocation4], %s17
      %s19 = sshll.u32 [#allocation3], 4
      %s20 = int_to_ptr.vmem [resolvable:$true] %s19
      %25 = dma.hbm_to_vmem [thread:$0]  %s0, 512, %s20, [#allocation4], 128, 128, 8
    $region5: #{tpu_custom_call.1} parent=1 // pred_fallthru
      _
    // Predicated region
    $region6: #{tpu_custom_call.1} parent=1 // pred_check
      _
    $region7: #{tpu_custom_call.1} parent=1 // pred_check_branch
      %27 = sbr.rel (0) target = $region9
    $region8: #{tpu_custom_call.1} parent=1 // pred_region
      %s29 = ssub.s32 256, 256
      %30 = vsyncadd [#allocation7], %s29
      %s31 = sshll.u32 [#allocation6], 4
      %s32 = int_to_ptr.vmem [resolvable:$true] %s31
      %37 = dma.hbm_to_vmem [thread:$0]  %s1, 256, %s32, [#allocation7], 128, 128, 8
    $region9: #{tpu_custom_call.1} parent=1 // pred_fallthru
      _
    // Predicated region
    $region10: #{tpu_custom_call.1} parent=1 // pred_check
      _
    $region11: #{tpu_custom_call.1} parent=1 // pred_check_branch
      %39 = sbr.rel (0) target = $region13
    $region12: #{tpu_custom_call.1} parent=1 // pred_region
      _
    $region13: #{tpu_custom_call.1} parent=1 // pred_fallthru
      _
    // Predicated region
    $region14: #{tpu_custom_call.1} parent=1 // pred_check
      _
    $region15: #{tpu_custom_call.1} parent=1 // pred_check_branch
      %41 = sbr.rel (0) target = $region17
    $region16: #{tpu_custom_call.1} parent=1 // pred_region
      %42 = dma.done [#allocation4], 512
    $region17: #{tpu_custom_call.1} parent=1 // pred_fallthru
      _
    // Predicated region
    $region18: #{tpu_custom_call.1} parent=1 // pred_check
      _
    $region19: #{tpu_custom_call.1} parent=1 // pred_check_branch
      %44 = sbr.rel (0) target = $region21
    $region20: #{tpu_custom_call.1} parent=1 // pred_region
      %45 = dma.done [#allocation7], 256
    $region21: #{tpu_custom_call.1} parent=1 // pred_fallthru
      _
    %p46 = scmp.eq.s32.totalorder 0, 0
    // Predicated region
    $region22: #{tpu_custom_call.1} parent=1 // pred_check
      %p47 = pneg %p46
    $region23: #{tpu_custom_call.1} parent=1 // pred_check_branch
      %49 = sbr.rel (%p47) target = $region25
    $region24: #{tpu_custom_call.1} parent=1 // pred_region
      %vm50 = vcmask 523264
      %51 = vst.msk [vmem:[#allocation2] sm:$0xff] %vm50, 0.0
      %52 = vst.msk [vmem:[#allocation2 + $0x8] sm:$0xff] %vm50, 0.0
      %53 = vst.msk [vmem:[#allocation2 + $0x10] sm:$0xff] %vm50, 0.0
      %54 = vst.msk [vmem:[#allocation2 + $0x18] sm:$0xff] %vm50, 0.0
    $region25: #{tpu_custom_call.1} parent=1 // pred_fallthru
      _
    %v55 = vld [vmem:[#allocation2] sm:$0xff]
    %v56 = vld [vmem:[#allocation2 + $0x8] sm:$0xff]
    %v57 = vld [vmem:[#allocation2 + $0x10] sm:$0xff]
    %v58 = vld [vmem:[#allocation2 + $0x18] sm:$0xff]
    %v59 = vld [vmem:[#allocation3] sm:$0xff]
    %v60 = vld [vmem:[#allocation3 + $0x8] sm:$0xff]
    %v61 = vld [vmem:[#allocation3 + $0x10] sm:$0xff]
    %v62 = vld [vmem:[#allocation3 + $0x18] sm:$0xff]
    %v63 = vadd.f32 %v55, %v59
    %v64 = vadd.f32 %v56, %v60
    %v65 = vadd.f32 %v57, %v61
    %v66 = vadd.f32 %v58, %v62
    %vm67 = vcmask 523264
    %68 = vst.msk [vmem:[#allocation2] sm:$0xff] %vm67, %v63
    %69 = vst.msk [vmem:[#allocation2 + $0x8] sm:$0xff] %vm67, %v64
    %70 = vst.msk [vmem:[#allocation2 + $0x10] sm:$0xff] %vm67, %v65
    %71 = vst.msk [vmem:[#allocation2 + $0x18] sm:$0xff] %vm67, %v66
    // Predicated region
    $region26: #{tpu_custom_call.1} parent=1 // pred_check
      %p72 = pneg %p46
    $region27: #{tpu_custom_call.1} parent=1 // pred_check_branch
      %74 = sbr.rel (%p72) target = $region29
    $region28: #{tpu_custom_call.1} parent=1 // pred_region
      %v75 = vld [vmem:[#allocation2] sm:$0xff]
      %v76 = vld [vmem:[#allocation2 + $0x8] sm:$0xff]
      %v77 = vld [vmem:[#allocation2 + $0x10] sm:$0xff]
      %v78 = vld [vmem:[#allocation2 + $0x18] sm:$0xff]
      %v79 = vsel %vm67, %v75, 0.0
      %80 = vadd.xlane.f32.xlu0 %v79
      %v81 = vpop.xlane.xlu0 %80
      %v82 = vsel %vm67, %v76, 0.0
      %83 = vadd.xlane.f32.xlu0 %v82
      %v84 = vpop.xlane.xlu0 %83
      %v85 = vsel %vm67, %v77, 0.0
      %86 = vadd.xlane.f32.xlu0 %v85
      %v87 = vpop.xlane.xlu0 %86
      %v88 = vsel %vm67, %v78, 0.0
      %89 = vadd.xlane.f32.xlu0 %v88
      %v90 = vpop.xlane.xlu0 %89
      %v91 = vmul.f32 %v81, 0.015625
      %v92 = vmul.f32 %v84, 0.015625
      %v93 = vmul.f32 %v87, 0.015625
      %v94 = vmul.f32 %v90, 0.015625
      %v99 = vlaneseq
      %v100 = vand.u32 %v99, 127
      %v101 = vlaneseq
      %v102 = vshrl.u32 %v101, 7
      %v103 = vsub.s32 %v100, %v102
      %v104 = vrot.slane %v91, %v103
      %v105 = vadd.s32 %v100, 4294967288
      %v106 = vlaneseq
      %v107 = vshrl.u32 %v106, 7
      %v108 = vsub.s32 %v105, %v107
      %v109 = vrot.slane %v92, %v108
      %vm110 = vcmask 130112
      %v111 = vsel %vm110, %v109, %v104
      %v112 = vlaneseq
      %v113 = vshrl.u32 %v112, 7
      %v114 = vsub.s32 %v100, %v113
      %v115 = vrot.slane %v93, %v114
      %v116 = vlaneseq
      %v117 = vshrl.u32 %v116, 7
      %v118 = vsub.s32 %v105, %v117
      %v119 = vrot.slane %v94, %v118
      %v120 = vsel %vm110, %v119, %v115
      %vm121 = vcmask 1041409
      %v122 = vsel %vm121, %v120, %v111
      %vm124 = vcmask 130048
      %v125 = vsel %vm124, %v122, 0.0
      %126 = vst [vmem:[#allocation9] sm:$0x3] %v125
      %v127 = vld [vmem:[#allocation6] sm:$0xff]
      %v128 = vld [vmem:[#allocation6 + $0x8] sm:$0xff]
      %v129 = vld [vmem:[%s2] sm:$0x1]
      %v131 = vlaneseq
      %v132 = vshrl.u32 %v131, 7
      %v133 = vsub.s32 0, %v132
      %v134 = vrot.slane %v129, %v133
      %v136 = vsel %vm124, %v122, 0
      %138 = vmatprep.subr.mxu0 0.0
      %139 = vmatpush1.msra.mxu0 %v127
      %140 = vmatprep.subr.mxu0 0.0
      %141 = vmatpush1.msra.mxu0 %v128
      %142 = vmatprep.subr.mxu0 0.0
      %143 = vmatpush1.msra.mxu0 0.0
      %144 = vmatprep.subr.mxu0 0.0
      %145 = vmatpush1.msra.mxu0 0.0
      %146 = vmatprep.subr.mxu0 0.0
      %147 = vmatpush1.msra.mxu0 0.0
      %148 = vmatprep.subr.mxu0 0.0
      %149 = vmatpush1.msra.mxu0 0.0
      %150 = vmatprep.subr.mxu0 0.0
      %151 = vmatpush1.msra.mxu0 0.0
      %152 = vmatprep.subr.mxu0 0.0
      %153 = vmatpush1.msra.mxu0 0.0
      %154 = vmatprep.subr.mxu0 0.0
      %155 = vmatpush1.msra.mxu0 0.0
      %156 = vmatprep.subr.mxu0 0.0
      %157 = vmatpush1.msra.mxu0 0.0
      %158 = vmatprep.subr.mxu0 0.0
      %159 = vmatpush1.msra.mxu0 0.0
      %160 = vmatprep.subr.mxu0 0.0
      %161 = vmatpush1.msra.mxu0 0.0
      %162 = vmatprep.subr.mxu0 0.0
      %163 = vmatpush1.msra.mxu0 0.0
      %164 = vmatprep.subr.mxu0 0.0
      %165 = vmatpush1.msra.mxu0 0.0
      %166 = vmatprep.subr.mxu0 0.0
      %167 = vmatpush1.msra.mxu0 0.0
      %168 = vmatprep.subr.mxu0 0.0
      %169 = vmatpush1.msra.mxu0 0.0
      %170 = vmatprep.subr.mxu0 0.0
      %171 = vmatpush1.msra.mxu0 0.0
      %172 = vmatprep.subr.mxu0 0.0
      %173 = vmatpush1.msra.mxu0 0.0
      %174 = vmatprep.subr.mxu0 0.0
      %175 = vmatpush1.msra.mxu0 0.0
      %176 = vmatprep.subr.mxu0 0.0
      %177 = vmatpush1.msra.mxu0 0.0
      %178 = vmatprep.subr.mxu0 0.0
      %179 = vmatpush1.msra.mxu0 0.0
      %180 = vmatprep.subr.mxu0 0.0
      %181 = vmatpush1.msra.mxu0 0.0
      %182 = vmatprep.subr.mxu0 0.0
      %183 = vmatpush1.msra.mxu0 0.0
      %184 = vmatprep.subr.mxu0 0.0
      %185 = vmatpush1.msra.mxu0 0.0
      %186 = vmatprep.subr.mxu0 0.0
      %187 = vmatpush1.msra.mxu0 0.0
      %188 = vmatprep.subr.mxu0 0.0
      %189 = vmatpush1.msra.mxu0 0.0
      %190 = vmatprep.subr.mxu0 0.0
      %191 = vmatpush1.msra.mxu0 0.0
      %192 = vmatprep.subr.mxu0 0.0
      %193 = vmatpush1.msra.mxu0 0.0
      %194 = vmatprep.subr.mxu0 0.0
      %195 = vmatpush1.msra.mxu0 0.0
      %196 = vmatprep.subr.mxu0 0.0
      %197 = vmatpush1.msra.mxu0 0.0
      %198 = vmatprep.subr.mxu0 0.0
      %199 = vmatpush1.msra.mxu0 0.0
      %200 = vmatprep.subr.mxu0 0.0
      %201 = vmatpush1.msra.mxu0 0.0
      %202 = vmatprep.mubr.f32.mxu0 0.0
      %203 = vmatmul.mubr.f32.gmra.mrb[0].mxu0 %v136
      %v204 = vpop.f32.mrb[0].mxu0
      %v205 = vadd.f32 %v134, %v204
      %v206 = vpop.f32.mrb[0].mxu0
      %207 = vdwg.mxu0
      %208 = vst [vmem:[#allocation8] sm:$0x3] %v205
    $region29: #{tpu_custom_call.1} parent=1 // pred_fallthru
      _
    // Predicated region
    $region30: #{tpu_custom_call.1} parent=1 // pred_check
      _
    $region31: #{tpu_custom_call.1} parent=1 // pred_check_branch
      %210 = sbr.rel (0) target = $region33
    $region32: #{tpu_custom_call.1} parent=1 // pred_region
      %s212 = ssub.s32 32, 32
      %213 = vsyncadd [#allocation5], %s212
      %s215 = sshll.u32 [#allocation8], 4
      %s216 = int_to_ptr.vmem [resolvable:$true] %s215
      %218 = dma.vmem_to_hbm [thread:$0]  %s216, 32, %s3, [#allocation5]
    $region33: #{tpu_custom_call.1} parent=1 // pred_fallthru
      _
    // Predicated region
    $region34: #{tpu_custom_call.1} parent=1 // pred_check
      _
    $region35: #{tpu_custom_call.1} parent=1 // pred_check_branch
      %220 = sbr.rel (0) target = $region37
    $region36: #{tpu_custom_call.1} parent=1 // pred_region
      %s222 = ssub.s32 32, 32
      %223 = vsyncadd [#allocation10], %s222
      %s225 = sshll.u32 [#allocation9], 4
      %s226 = int_to_ptr.vmem [resolvable:$true] %s225
      %228 = dma.vmem_to_hbm [thread:$0]  %s226, 32, %s4, [#allocation10]
    $region37: #{tpu_custom_call.1} parent=1 // pred_fallthru
      _
    // Predicated region
    $region38: #{tpu_custom_call.1} parent=1 // pred_check
      _
    $region39: #{tpu_custom_call.1} parent=1 // pred_check_branch
      %230 = sbr.rel (0) target = $region41
    $region40: #{tpu_custom_call.1} parent=1 // pred_region
      %231 = dma.done [#allocation5], 32
    $region41: #{tpu_custom_call.1} parent=1 // pred_fallthru
      _
    // Predicated region
    $region42: #{tpu_custom_call.1} parent=1 // pred_check
      _
    $region43: #{tpu_custom_call.1} parent=1 // pred_check_branch
      %233 = sbr.rel (0) target = $region45
    $region44: #{tpu_custom_call.1} parent=1 // pred_region
      %234 = dma.done [#allocation10], 32
    $region45: #{tpu_custom_call.1} parent=1 // pred_fallthru
      _
    %235 = vsyncpa [#allocation4], 1
    %236 = vsyncpa [#allocation7], 1
    %237 = vsyncpa [#allocation5], 1
    %238 = vsyncpa [#allocation10], 1

</llo_original>
